<compile_context>
chip_gen: v7x
topology: tpu7x:2x2x1
jax: 0.10.0
libtpu: 0.0.40
codegen_flags: <defaults>
</compile_context>

<pallas_src>
import functools

import jax
import jax.numpy as jnp
from jax import lax
from jax.experimental import pallas as pl
from jax.experimental.pallas import tpu as pltpu


def _round_up(x, m):
    return (x + m - 1) // m * m


def _vmem_capacity_bytes():
    try:
        return int(pltpu.get_tpu_info().vmem_capacity_bytes)
    except Exception:
        return 64 * 1024 * 1024            # conservative (v7x per-TensorCore)


def _src_coords(out_size, in_size):
    """Per-pixel un-normalized source coordinate (grid_sample align_corners=False)."""
    i = jnp.arange(out_size, dtype=jnp.float32)
    if out_size > 1:
        coord = i / (out_size - 1) * 2.0 - 1.0
    else:
        # Degenerate axis: the torch module would divide by zero; sample center.
        coord = jnp.zeros((out_size,), jnp.float32)
    return ((coord + 1.0) * in_size - 1.0) * 0.5


def _plan_tiles(hw, n_rows, n, cp, gg, op_bytes, vmem_cap_bytes):
    """Pick (pixel-tile lanes tp, in-kernel chunk lanes tc, padded HW)."""
    small_vmem = vmem_cap_bytes <= 64 * 1024 * 1024        # v7x: 64 MiB per TC
    budget = (8 if small_vmem else 28) * 1024 * 1024       # tile VMEM budget
    max_lanes = 2048 if small_vmem else 8192

    # Double-buffered pipelined blocks (f32): guide (N) + fy + fx + out (N*Cp).
    per_lane = 4 * 2 * (n + 2 + n * cp)
    # VMEM-resident bilateral-grid block (2 pipeline buffers; DMA'd only once
    # since its block index never changes).
    resident = 2 * n_rows * gg * op_bytes
    cap = max(128, (budget - resident) // per_lane)
    cap = max(128, int(min(cap, max_lanes)) // 128 * 128)

    hw128 = _round_up(hw, 128)
    # Keep >=4 grid steps when the image allows (2 per TensorCore on v7x).
    if hw128 >= 2 * 128:
        cap = min(cap, max(128, _round_up(pl.cdiv(hw128, 4), 128)))
    tp = max(128, min(cap, hw128))

    # In-kernel lane sub-chunk: keep each (n_rows, tc) f32 matmul result close
    # to vreg-resident (<=128 KiB) instead of staging (n_rows, tp) in VMEM.
    tc = 128
    while tc * 2 <= min(tp, 512) and n_rows * (tc * 2) * 4 <= 128 * 1024:
        tc *= 2
    tp = _round_up(tp, tc)
    hw_pad = _round_up(hw128, tp)
    return tp, tc, hw_pad


def _slice_kernel(ga_ref, guide_ref, fy_ref, fx_ref, out_ref, *,
                  N, Cp, D, Hg, Wg, Tc, op_dtype):
    """One pixel-tile of bilateral-grid slicing.

    ga_ref:    (N*D*Cp, Hg*Wg)  grid planes, rows ordered (n, d, c), MXU dtype
    guide_ref: (N, Tp)          guide values (z coordinate) for this pixel tile
    fy_ref:    (1, Tp)          un-normalized y source coordinate per pixel
    fx_ref:    (1, Tp)          un-normalized x source coordinate per pixel
    out_ref:   (N, Cp, Tp)      sliced coefficients
    """
    GG = Hg * Wg
    Tp = out_ref.shape[-1]
    num_chunks = Tp // Tc

    for ci in range(num_chunks):                       # small static unroll
        lo = ci * Tc
        hi = lo + Tc
        fy = fy_ref[:, lo:hi]                          # (1, Tc)
        fx = fx_ref[:, lo:hi]                          # (1, Tc)

        # ---- separable spatial hat weights, built directly in vregs --------
        # s[gy*Wg+gx, p] = max(0,1-|fy[p]-gy|) * max(0,1-|fx[p]-gx|)
        # Out-of-range taps get weight 0 == grid_sample padding_mode='zeros'.
        gx = lax.broadcasted_iota(jnp.int32, (Wg, Tc), 0).astype(jnp.float32)
        wx = jnp.maximum(0.0, 1.0 - jnp.abs(fx - gx))              # (Wg, Tc)
        gy = lax.broadcasted_iota(jnp.int32, (Hg, Tc), 0).astype(jnp.float32)
        wy = jnp.maximum(0.0, 1.0 - jnp.abs(fy - gy))              # (Hg, Tc)
        s = (wy[:, None, :] * wx[None, :, :]).reshape(GG, Tc).astype(op_dtype)

        # ---- spatial interpolation of all (n, d, c) planes: one MXU matmul --
        # (K = GG is only 64 for 8x8 grids -> MXU is depth-limited there; the
        #  dominant costs are the weight build + depth combine, kept on VPU.)
        t = jnp.dot(ga_ref[...], s, preferred_element_type=jnp.float32)
        t4 = t.reshape(N, D, Cp, Tc)                   # free: Cp % 8 == 0

        # ---- data-dependent depth (guide) interpolation, vectorized over D --
        g = guide_ref[:, lo:hi].astype(jnp.float32)                # (N, Tc)
        fz = ((g + 1.0) * D - 1.0) * 0.5               # align_corners=False
        dz = lax.broadcasted_iota(jnp.int32, (D, Tc), 0).astype(jnp.float32)
        wz = jnp.maximum(0.0, 1.0 - jnp.abs(fz[:, None, :] - dz[None, :, :]))

        acc = jnp.sum(t4 * wz[:, :, None, :], axis=1)              # (N, Cp, Tc)
        out_ref[:, :, lo:hi] = acc.astype(out_ref.dtype)


def slice_pallas(bilateral_grid, guidemap, *, precision="bfloat16"):
    """Pallas TPU equivalent of the PyTorch Slice.forward."""
    N, C, D, Hg, Wg = bilateral_grid.shape
    Ng, Cg, H, W = guidemap.shape
    assert Ng == N and Cg == 1
    HW = H * W
    GG = Hg * Wg
    Cp = _round_up(C, 8)                       # 8-sublane aligned channel slabs
    op_dtype = jnp.bfloat16 if precision == "bfloat16" else jnp.float32
    op_bytes = 2 if op_dtype == jnp.bfloat16 else 4

    # Layout glue (outside the kernel): lane-dense flattened views.
    bg = bilateral_grid
    if Cp != C:
        bg = jnp.pad(bg, ((0, 0), (0, Cp - C), (0, 0), (0, 0), (0, 0)))
    ga = jnp.transpose(bg, (0, 2, 1, 3, 4)).reshape(N * D * Cp, GG).astype(op_dtype)

    # Per-pixel un-normalized spatial source coordinates (only 2*HW floats).
    fy_h = _src_coords(H, Hg)                                     # (H,)
    fx_w = _src_coords(W, Wg)                                     # (W,)
    fy = jnp.broadcast_to(fy_h[:, None], (H, W)).reshape(1, HW)
    fx = jnp.broadcast_to(fx_w[None, :], (H, W)).reshape(1, HW)
    guide = guidemap.reshape(N, HW).astype(jnp.float32)

    vmem_cap = _vmem_capacity_bytes()
    tp, tc, hw_pad = _plan_tiles(HW, N * D * Cp, N, Cp, GG, op_bytes, vmem_cap)
    if hw_pad != HW:                           # pad-and-crop: lane-dense tiles
        pad = hw_pad - HW
        guide = jnp.pad(guide, ((0, 0), (0, pad)))
        fy = jnp.pad(fy, ((0, 0), (0, pad)))
        fx = jnp.pad(fx, ((0, 0), (0, pad)))
    num_tiles = hw_pad // tp

    kernel = functools.partial(_slice_kernel, N=N, Cp=Cp, D=D, Hg=Hg, Wg=Wg,
                               Tc=tc, op_dtype=op_dtype)
    out = pl.pallas_call(
        kernel,
        out_shape=jax.ShapeDtypeStruct((N, Cp, hw_pad), jnp.float32),
        grid_spec=pltpu.PrefetchScalarGridSpec(
            num_scalar_prefetch=0,
            grid=(num_tiles,),
            in_specs=[
                # bilateral grid: constant block index -> VMEM-resident, DMA'd once
                pl.BlockSpec((N * D * Cp, GG), lambda p: (0, 0)),
                pl.BlockSpec((N, tp), lambda p: (0, p)),
                pl.BlockSpec((1, tp), lambda p: (0, p)),
                pl.BlockSpec((1, tp), lambda p: (0, p)),
            ],
            out_specs=pl.BlockSpec((N, Cp, tp), lambda p: (0, 0, p)),
        ),
        compiler_params=pltpu.CompilerParams(
            dimension_semantics=("parallel",),
            vmem_limit_bytes=(40 if vmem_cap <= 64 * 1024 * 1024 else 64)
                             * 1024 * 1024,
        ),
    )(ga, guide, fy, fx)
    return out[:, :C, :HW].reshape(N, C, H, W)


def slice_reference(bilateral_grid, guidemap):
    """Pure-JAX gather-based trilinear grid_sample reference
    (align_corners=False, padding_mode='zeros')."""
    N, C, D, Hg, Wg = bilateral_grid.shape
    _, _, H, W = guidemap.shape
    hg, wg = jnp.meshgrid(jnp.arange(H, dtype=jnp.float32),
                          jnp.arange(W, dtype=jnp.float32), indexing="ij")
    y = jnp.broadcast_to(hg / (H - 1) * 2.0 - 1.0, (N, H, W))
    x = jnp.broadcast_to(wg / (W - 1) * 2.0 - 1.0, (N, H, W))
    z = guidemap[:, 0]                                        # (N, H, W)

    fx = ((x + 1.0) * Wg - 1.0) * 0.5
    fy = ((y + 1.0) * Hg - 1.0) * 0.5
    fz = ((z + 1.0) * D - 1.0) * 0.5
    x0, y0, z0 = jnp.floor(fx), jnp.floor(fy), jnp.floor(fz)

    vol = bilateral_grid.reshape(N, C, D * Hg * Wg)
    out = jnp.zeros((N, C, H, W), jnp.float32)
    for dz in (0.0, 1.0):
        for dy in (0.0, 1.0):
            for dx in (0.0, 1.0):
                xi, yi, zi = x0 + dx, y0 + dy, z0 + dz
                w = ((1.0 - jnp.abs(fx - xi)) * (1.0 - jnp.abs(fy - yi))
                     * (1.0 - jnp.abs(fz - zi)))
                valid = ((xi >= 0) & (xi < Wg) & (yi >= 0) & (yi < Hg)
                         & (zi >= 0) & (zi < D)).astype(jnp.float32)
                xi_c = jnp.clip(xi, 0, Wg - 1).astype(jnp.int32)
                yi_c = jnp.clip(yi, 0, Hg - 1).astype(jnp.int32)
                zi_c = jnp.clip(zi, 0, D - 1).astype(jnp.int32)
                idx = (zi_c * Hg + yi_c) * Wg + xi_c          # (N, H, W)
                vals = jnp.take_along_axis(
                    vol, idx.reshape(N, 1, H * W), axis=2).reshape(N, C, H, W)
                out = out + (w * valid)[:, None] * vals
    return out


if __name__ == "__main__":
    key = jax.random.PRNGKey(0)
    k1, k2 = jax.random.split(key)
    # HDRNet-like small shapes: C=12 exercises the Cp=16 channel padding path,
    # H=W=15 (HW=225) exercises the pad-to-128-multiple-and-crop path.
    N, C, D, Hg, Wg = 2, 12, 8, 8, 8
    H, W = 15, 15
    bilateral_grid = jax.random.normal(k1, (N, C, D, Hg, Wg), jnp.float32)
    guidemap = jax.random.uniform(k2, (N, 1, H, W), jnp.float32,
                                  minval=-1.0, maxval=1.0)

    ref = jax.block_until_ready(slice_reference(bilateral_grid, guidemap))

    # Exact (f32-MXU) path.
    out_f32 = jax.block_until_ready(
        slice_pallas(bilateral_grid, guidemap, precision="float32"))
    assert out_f32.shape == (N, C, H, W)
    err_f32 = float(jnp.max(jnp.abs(out_f32 - ref)))
    assert err_f32 < 1e-4, err_f32

    # Fast (bf16-MXU, default) path — looser tolerance per bf16 operand quant.
    out_bf16 = jax.block_until_ready(slice_pallas(bilateral_grid, guidemap))
    assert out_bf16.shape == (N, C, H, W)
    err_bf16 = float(jnp.max(jnp.abs(out_bf16 - ref)))
    assert err_bf16 < 5e-2, err_bf16

    print("KERNEL_OK")
</pallas_src>

<mosaic_0001>
module attributes {stable_mosaic.version = 11 : i64} {
  func.func @_slice_kernel(%arg0: i32, %arg1: memref<256x64xf32, #tpu.memory_space<vmem>>, %arg2: memref<2x128xf32, #tpu.memory_space<vmem>>, %arg3: memref<1x128xf32, #tpu.memory_space<vmem>>, %arg4: memref<1x128xf32, #tpu.memory_space<vmem>>, %arg5: memref<2x16x128xf32, #tpu.memory_space<vmem>>) attributes {dimension_semantics = [#tpu.dimension_semantics<parallel>], iteration_bounds = array<i64: 2>, scalar_prefetch = 0 : i64, scratch_operands = 0 : i64, tpu.core_type = #tpu.core_type<tc>, window_params = [{pipeline_mode = #tpu.pipeline_mode<synchronous>, transform_indices = @transform_0, window_bounds = array<i64: 256, 64>}, {transform_indices = @transform_1, window_bounds = array<i64: 2, 128>}, {transform_indices = @transform_2, window_bounds = array<i64: 1, 128>}, {transform_indices = @transform_3, window_bounds = array<i64: 1, 128>}, {transform_indices = @transform_4, window_bounds = array<i64: 2, 16, 128>}]} {
    %c0 = arith.constant 0 : index
    %c0_0 = arith.constant 0 : index
    %0 = vector.load %arg3[%c0, %c0_0] : memref<1x128xf32, #tpu.memory_space<vmem>>, vector<1x128xf32>
    %c0_1 = arith.constant 0 : index
    %c0_2 = arith.constant 0 : index
    %1 = vector.load %arg4[%c0_1, %c0_2] : memref<1x128xf32, #tpu.memory_space<vmem>>, vector<1x128xf32>
    %2 = tpu.iota {dimensions = array<i32: 0>} : vector<8x128xi32>
    %3 = arith.sitofp %2 : vector<8x128xi32> to vector<8x128xf32>
    %4 = vector.broadcast %1 : vector<1x128xf32> to vector<8x128xf32>
    %5 = arith.subf %4, %3 : vector<8x128xf32>
    %6 = math.absf %5 : vector<8x128xf32>
    %cst = arith.constant 1.000000e+00 : f32
    %7 = vector.broadcast %cst : f32 to vector<8x128xf32>
    %8 = arith.subf %7, %6 : vector<8x128xf32>
    %cst_3 = arith.constant 0.000000e+00 : f32
    %9 = vector.broadcast %cst_3 : f32 to vector<8x128xf32>
    %10 = arith.maximumf %9, %8 : vector<8x128xf32>
    %11 = tpu.iota {dimensions = array<i32: 0>} : vector<8x128xi32>
    %12 = arith.sitofp %11 : vector<8x128xi32> to vector<8x128xf32>
    %13 = vector.broadcast %0 : vector<1x128xf32> to vector<8x128xf32>
    %14 = arith.subf %13, %12 : vector<8x128xf32>
    %15 = math.absf %14 : vector<8x128xf32>
    %cst_4 = arith.constant 1.000000e+00 : f32
    %16 = vector.broadcast %cst_4 : f32 to vector<8x128xf32>
    %17 = arith.subf %16, %15 : vector<8x128xf32>
    %cst_5 = arith.constant 0.000000e+00 : f32
    %18 = vector.broadcast %cst_5 : f32 to vector<8x128xf32>
    %19 = arith.maximumf %18, %17 : vector<8x128xf32>
    %20 = vector.shape_cast %19 : vector<8x128xf32> to vector<8x1x128xf32>
    %21 = vector.shape_cast %10 : vector<8x128xf32> to vector<1x8x128xf32>
    %22 = vector.broadcast %20 : vector<8x1x128xf32> to vector<8x8x128xf32>
    %23 = vector.broadcast %21 : vector<1x8x128xf32> to vector<8x8x128xf32>
    %24 = arith.mulf %22, %23 : vector<8x8x128xf32>
    %25 = vector.shape_cast %24 : vector<8x8x128xf32> to vector<64x128xf32>
    %c0_6 = arith.constant 0 : index
    %c0_7 = arith.constant 0 : index
    %26 = vector.load %arg1[%c0_6, %c0_7] : memref<256x64xf32, #tpu.memory_space<vmem>>, vector<256x64xf32>
    %cst_8 = arith.constant dense<0.000000e+00> : vector<256x128xf32>
    %27 = tpu.matmul %26, %25, %cst_8 {dimension_numbers = #tpu.dot_dimension_numbers<[1], [0], [0], [1], [0, 0, 1, 1], [], []>} : vector<256x64xf32>, vector<64x128xf32>, vector<256x128xf32> -> vector<256x128xf32>
    %28 = vector.shape_cast %27 : vector<256x128xf32> to vector<2x8x16x128xf32>
    %c0_9 = arith.constant 0 : index
    %c0_10 = arith.constant 0 : index
    %29 = vector.load %arg2[%c0_9, %c0_10] : memref<2x128xf32, #tpu.memory_space<vmem>>, vector<2x128xf32>
    %cst_11 = arith.constant 1.000000e+00 : f32
    %30 = vector.broadcast %cst_11 : f32 to vector<2x128xf32>
    %31 = arith.addf %29, %30 : vector<2x128xf32>
    %cst_12 = arith.constant 8.000000e+00 : f32
    %32 = vector.broadcast %cst_12 : f32 to vector<2x128xf32>
    %33 = arith.mulf %31, %32 : vector<2x128xf32>
    %cst_13 = arith.constant 1.000000e+00 : f32
    %34 = vector.broadcast %cst_13 : f32 to vector<2x128xf32>
    %35 = arith.subf %33, %34 : vector<2x128xf32>
    %cst_14 = arith.constant 5.000000e-01 : f32
    %36 = vector.broadcast %cst_14 : f32 to vector<2x128xf32>
    %37 = arith.mulf %35, %36 : vector<2x128xf32>
    %38 = tpu.iota {dimensions = array<i32: 0>} : vector<8x128xi32>
    %39 = arith.sitofp %38 : vector<8x128xi32> to vector<8x128xf32>
    %40 = vector.shape_cast %37 : vector<2x128xf32> to vector<2x1x128xf32>
    %41 = vector.shape_cast %39 : vector<8x128xf32> to vector<1x8x128xf32>
    %42 = vector.broadcast %40 : vector<2x1x128xf32> to vector<2x8x128xf32>
    %43 = vector.broadcast %41 : vector<1x8x128xf32> to vector<2x8x128xf32>
    %44 = arith.subf %42, %43 : vector<2x8x128xf32>
    %45 = math.absf %44 : vector<2x8x128xf32>
    %cst_15 = arith.constant 1.000000e+00 : f32
    %46 = vector.broadcast %cst_15 : f32 to vector<2x8x128xf32>
    %47 = arith.subf %46, %45 : vector<2x8x128xf32>
    %cst_16 = arith.constant 0.000000e+00 : f32
    %48 = vector.broadcast %cst_16 : f32 to vector<2x8x128xf32>
    %49 = arith.maximumf %48, %47 : vector<2x8x128xf32>
    %50 = vector.shape_cast %49 : vector<2x8x128xf32> to vector<2x8x1x128xf32>
    %51 = vector.broadcast %50 : vector<2x8x1x128xf32> to vector<2x8x16x128xf32>
    %52 = arith.mulf %28, %51 : vector<2x8x16x128xf32>
    %cst_17 = arith.constant dense<0.000000e+00> : vector<2x16x128xf32>
    %53 = vector.multi_reduction <add>, %52, %cst_17 [1] : vector<2x8x16x128xf32> to vector<2x16x128xf32>
    %c0_18 = arith.constant 0 : index
    %c0_19 = arith.constant 0 : index
    %c0_20 = arith.constant 0 : index
    %54 = vector.load %arg5[%c0_18, %c0_19, %c0_20] : memref<2x16x128xf32, #tpu.memory_space<vmem>>, vector<2x16x128xf32>
    tpu.vector_store %arg5[%c0_18, %c0_19, %c0_20], %53 {strides = array<i32>} : memref<2x16x128xf32, #tpu.memory_space<vmem>>, vector<2x16x128xf32>,
    return
  }
  func.func @transform_0(%arg0: i32) -> (i32, i32) {
    %c0_i32 = arith.constant 0 : i32
    %c0_i32_0 = arith.constant 0 : i32
    %c0_i32_1 = arith.constant 0 : i32
    return %c0_i32, %c0_i32_0 : i32, i32
  }
  func.func @transform_1(%arg0: i32) -> (i32, i32) {
    %c0_i32 = arith.constant 0 : i32
    %c0_i32_0 = arith.constant 0 : i32
    return %c0_i32, %arg0 : i32, i32
  }
  func.func @transform_2(%arg0: i32) -> (i32, i32) {
    %c0_i32 = arith.constant 0 : i32
    %c0_i32_0 = arith.constant 0 : i32
    return %c0_i32, %arg0 : i32, i32
  }
  func.func @transform_3(%arg0: i32) -> (i32, i32) {
    %c0_i32 = arith.constant 0 : i32
    %c0_i32_0 = arith.constant 0 : i32
    return %c0_i32, %arg0 : i32, i32
  }
  func.func @transform_4(%arg0: i32) -> (i32, i32, i32) {
    %c0_i32 = arith.constant 0 : i32
    %c0_i32_0 = arith.constant 0 : i32
    %c0_i32_1 = arith.constant 0 : i32
    return %c0_i32, %c0_i32_0, %arg0 : i32, i32, i32
  }
}

</mosaic_0001>

<llo_original>
// kernel: tpu_custom_call.1
$region0: #{tpu_custom_call.1}
  #allocation0 [shape = 'u32[]', space=smem, size = 0x4, offset = 0x4, fixed_abs, tag = 'smem constant byte address 0x4 - core index']
  #allocation1 [shape = 'u32[144,128]{1,0:T(1,128)}', space=vmem, size = 0x12000, scoped, tag = 'internal scratch']
  %s0 = inlined_call_operand.vmem [shape: f32[256,64], index: 0, kind: input, shape index: {}]
  %s1 = inlined_call_operand.vmem [shape: f32[2,256], index: 1, kind: input, shape index: {}]
  %s2 = inlined_call_operand.vmem [shape: f32[1,256], index: 2, kind: input, shape index: {}]
  %s3 = inlined_call_operand.vmem [shape: f32[1,256], index: 3, kind: input, shape index: {}]
  %s4 = inlined_call_operand.hbm [shape: f32[2,16,256], index: 4, kind: output, shape index: {}]
  %s5 = sld [smem:[#allocation0]]
  $region49: #{tpu_custom_call.1} parent=0
    _
  %s7 = ssub.s32 1, %s5
  %s8 = scalar_select 0, %s7, %s5
  $region1: #{tpu_custom_call.1} parent=0
    #allocation2 [shape = 'u8[32768]{0}', space=vmem, size = 0x8000, scoped, tag = 'output window, operand 0']
    #allocation3 [shape = 's32[2]{0}', space=sflag, size = 0x8, scoped, tag = 'scoped memory for tpu_custom_call.1']
    %9 = vsyncpa [#allocation3], 0
    %s10 = scalar_lea.sflag [#allocation3], 1
    %11 = vsyncpa %s10, 0
    loop: start=0, step=1, limit=4
    $region2: #{tpu_custom_call.1} parent=1 // loop_pre_header
      _
    $region3: #{tpu_custom_call.1} parent=1 // loop_header
      %s13 = sphi 0, %s17
      %p14 = scmp.ge.s32.totalorder %s13, 4
      %s21 = sphi 0, %s21
      %s23 = sphi 0, %s21
      %s24 = sphi 0, %s23
      %s38 = sphi 0, %s24
      %s44 = sphi 0, %s46
      %s47 = sphi 0, %s44
      %s48 = sphi 0, %s47
      %s64 = sphi 0, %s48
      %s70 = sphi 0, %s72
      %s73 = sphi 0, %s70
      %s74 = sphi 0, %s73
      %s90 = sphi 0, %s74
      %s96 = sphi 0, %s98
      %s99 = sphi 0, %s96
      %s100 = sphi 0, %s99
      %s116 = sphi 0, %s100
      %s122 = sphi 0, %s124
      %s125 = sphi 0, %s122
      %s126 = sphi 0, %s125
      %s142 = sphi 0, %s126
    $region4: #{tpu_custom_call.1} parent=1 // loop_header_branch
      %16 = sbr.rel (%p14) target = $region8
    $region5: #{tpu_custom_call.1} parent=1 // loop_body
      %s18 = ssub.s32 %s13, 1
      %s19 = ssub.s32 %s13, 2
      %s20 = sadd.s32 %s13, 1
      %s22 = sadd.s32 %s21, 1
      %p25 = scmp.eq.s32.totalorder %s13, 1
      %p26 = scmp.ne.s32.totalorder %s21, %s23
      %p27 = scmp.eq.s32.totalorder %s13, 0
      %p28 = por %p26, %p27
      %p29 = scmp.ne.s32.totalorder %s21, %s23
      %p30 = scmp.eq.s32.totalorder %s18, 1
      %p31 = por %p29, %p30
      %p32 = scmp.ne.s32.totalorder %s23, %s24
      %p33 = scmp.eq.s32.totalorder %s18, 0
      %p34 = por %p32, %p33
      %p35 = scmp.ne.s32.totalorder %s23, %s24
      %p36 = scmp.eq.s32.totalorder %s19, 1
      %p37 = por %p35, %p36
      %p39 = scmp.ne.s32.totalorder %s24, %s38
      %p40 = scmp.eq.s32.totalorder %s19, 0
      %p41 = por %p39, %p40
      %s42 = ssub.s32 %s13, %s20
      %p43 = scmp.eq.s32.totalorder %s42, 0
      %s45 = sadd.s32 %s44, 1
      %s46 = scalar_select %p43, %s44, %s45
      %p49 = pneg %p43
      %p50 = scmp.eq.s32.totalorder %s13, 1
      %p51 = por %p49, %p50
      %p52 = scmp.ne.s32.totalorder %s44, %s47
      %p53 = scmp.eq.s32.totalorder %s13, 0
      %p54 = por %p52, %p53
      %p55 = scmp.ne.s32.totalorder %s44, %s47
      %p56 = scmp.eq.s32.totalorder %s18, 1
      %p57 = por %p55, %p56
      %p58 = scmp.ne.s32.totalorder %s47, %s48
      %p59 = scmp.eq.s32.totalorder %s18, 0
      %p60 = por %p58, %p59
      %p61 = scmp.ne.s32.totalorder %s47, %s48
      %p62 = scmp.eq.s32.totalorder %s19, 1
      %p63 = por %p61, %p62
      %p65 = scmp.ne.s32.totalorder %s48, %s64
      %p66 = scmp.eq.s32.totalorder %s19, 0
      %p67 = por %p65, %p66
      %s68 = ssub.s32 %s13, %s20
      %p69 = scmp.eq.s32.totalorder %s68, 0
      %s71 = sadd.s32 %s70, 1
      %s72 = scalar_select %p69, %s70, %s71
      %p75 = pneg %p69
      %p76 = scmp.eq.s32.totalorder %s13, 1
      %p77 = por %p75, %p76
      %p78 = scmp.ne.s32.totalorder %s70, %s73
      %p79 = scmp.eq.s32.totalorder %s13, 0
      %p80 = por %p78, %p79
      %p81 = scmp.ne.s32.totalorder %s70, %s73
      %p82 = scmp.eq.s32.totalorder %s18, 1
      %p83 = por %p81, %p82
      %p84 = scmp.ne.s32.totalorder %s73, %s74
      %p85 = scmp.eq.s32.totalorder %s18, 0
      %p86 = por %p84, %p85
      %p87 = scmp.ne.s32.totalorder %s73, %s74
      %p88 = scmp.eq.s32.totalorder %s19, 1
      %p89 = por %p87, %p88
      %p91 = scmp.ne.s32.totalorder %s74, %s90
      %p92 = scmp.eq.s32.totalorder %s19, 0
      %p93 = por %p91, %p92
      %s94 = ssub.s32 %s13, %s20
      %p95 = scmp.eq.s32.totalorder %s94, 0
      %s97 = sadd.s32 %s96, 1
      %s98 = scalar_select %p95, %s96, %s97
      %p101 = pneg %p95
      %p102 = scmp.eq.s32.totalorder %s13, 1
      %p103 = por %p101, %p102
      %p104 = scmp.ne.s32.totalorder %s96, %s99
      %p105 = scmp.eq.s32.totalorder %s13, 0
      %p106 = por %p104, %p105
      %p107 = scmp.ne.s32.totalorder %s96, %s99
      %p108 = scmp.eq.s32.totalorder %s18, 1
      %p109 = por %p107, %p108
      %p110 = scmp.ne.s32.totalorder %s99, %s100
      %p111 = scmp.eq.s32.totalorder %s18, 0
      %p112 = por %p110, %p111
      %p113 = scmp.ne.s32.totalorder %s99, %s100
      %p114 = scmp.eq.s32.totalorder %s19, 1
      %p115 = por %p113, %p114
      %p117 = scmp.ne.s32.totalorder %s100, %s116
      %p118 = scmp.eq.s32.totalorder %s19, 0
      %p119 = por %p117, %p118
      %s120 = ssub.s32 %s13, %s20
      %p121 = scmp.eq.s32.totalorder %s120, 0
      %s123 = sadd.s32 %s122, 1
      %s124 = scalar_select %p121, %s122, %s123
      %p127 = pneg %p121
      %p128 = scmp.eq.s32.totalorder %s13, 1
      %p129 = por %p127, %p128
      %p130 = scmp.ne.s32.totalorder %s122, %s125
      %p131 = scmp.eq.s32.totalorder %s13, 0
      %p132 = por %p130, %p131
      %p133 = scmp.ne.s32.totalorder %s122, %s125
      %p134 = scmp.eq.s32.totalorder %s18, 1
      %p135 = por %p133, %p134
      %p136 = scmp.ne.s32.totalorder %s125, %s126
      %p137 = scmp.eq.s32.totalorder %s18, 0
      %p138 = por %p136, %p137
      %p139 = scmp.ne.s32.totalorder %s125, %s126
      %p140 = scmp.eq.s32.totalorder %s19, 1
      %p141 = por %p139, %p140
      %p143 = scmp.ne.s32.totalorder %s126, %s142
      %p144 = scmp.eq.s32.totalorder %s19, 0
      %p145 = por %p143, %p144
      %p146 = scmp.le.s32.totalorder 1, %s13
      %p147 = scmp.lt.s32.totalorder %s13, 3
      %p148 = pnand %p146, %p147
      %p149 = pneg %p148
      // Predicated region
      $region9: #{tpu_custom_call.1} parent=5 // pred_check
        _
      $region10: #{tpu_custom_call.1} parent=5 // pred_check_branch
        %151 = sbr.rel (%p148) target = $region12
      $region11: #{tpu_custom_call.1} parent=5 // pred_region
        %s152 = ssub.s32 %s13, 1
        // Predicated region
        $region13: #{tpu_custom_call.1} parent=11 // pred_check
          %p153 = pneg %p34
        $region14: #{tpu_custom_call.1} parent=11 // pred_check_branch
          %155 = sbr.rel (%p153) target = $region16
        $region15: #{tpu_custom_call.1} parent=11 // pred_region
          _
        $region16: #{tpu_custom_call.1} parent=11 // pred_fallthru
          _
      $region12: #{tpu_custom_call.1} parent=5 // pred_fallthru
        _
      %p156 = scmp.lt.s32.totalorder %s13, 2
      // Predicated region
      $region17: #{tpu_custom_call.1} parent=5 // pred_check
        %p157 = pneg %p156
      $region18: #{tpu_custom_call.1} parent=5 // pred_check_branch
        %159 = sbr.rel (%p157) target = $region20
      $region19: #{tpu_custom_call.1} parent=5 // pred_region
        // Predicated region
        $region21: #{tpu_custom_call.1} parent=19 // pred_check
          %p160 = pneg %p54
        $region22: #{tpu_custom_call.1} parent=19 // pred_check_branch
          %162 = sbr.rel (%p160) target = $region24
        $region23: #{tpu_custom_call.1} parent=19 // pred_region
          %p163 = scmp.lt.s32.totalorder %s13, 1
          %s164 = scalar_select %p163, %s13, 1
          %s165 = smul.addr %s164, 2
          %s166 = scalar_lea.vmem %s1, %s165
        $region24: #{tpu_custom_call.1} parent=19 // pred_fallthru
          _
        // Predicated region
        $region25: #{tpu_custom_call.1} parent=19 // pred_check
          %p167 = pneg %p80
        $region26: #{tpu_custom_call.1} parent=19 // pred_check_branch
          %169 = sbr.rel (%p167) target = $region28
        $region27: #{tpu_custom_call.1} parent=19 // pred_region
          %p170 = scmp.lt.s32.totalorder %s13, 1
          %s171 = scalar_select %p170, %s13, 1
          %s172 = scalar_lea.vmem %s2, %s171
        $region28: #{tpu_custom_call.1} parent=19 // pred_fallthru
          _
        // Predicated region
        $region29: #{tpu_custom_call.1} parent=19 // pred_check
          %p173 = pneg %p106
        $region30: #{tpu_custom_call.1} parent=19 // pred_check_branch
          %175 = sbr.rel (%p173) target = $region32
        $region31: #{tpu_custom_call.1} parent=19 // pred_region
          %p176 = scmp.lt.s32.totalorder %s13, 1
          %s177 = scalar_select %p176, %s13, 1
          %s178 = scalar_lea.vmem %s3, %s177
        $region32: #{tpu_custom_call.1} parent=19 // pred_fallthru
          _
      $region20: #{tpu_custom_call.1} parent=5 // pred_fallthru
        _
      %p179 = scmp.le.s32.totalorder 1, %s13
      %p180 = scmp.lt.s32.totalorder %s13, 3
      %p181 = pnand %p179, %p180
      %p182 = pneg %p181
      // Predicated region
      $region33: #{tpu_custom_call.1} parent=5 // pred_check
        _
      $region34: #{tpu_custom_call.1} parent=5 // pred_check_branch
        %184 = sbr.rel (%p181) target = $region36
      $region35: #{tpu_custom_call.1} parent=5 // pred_region
        %s185 = ssub.s32 %s13, 1
        %p186 = pneg %p34
        %p187 = pneg %p31
        %p188 = scmp.lt.s32.totalorder %s18, 1
        %s189 = scalar_select %p188, %s18, 1
        %s190 = smul.addr %s189, 2
        %s191 = scalar_lea.vmem %s1, %s190
        %p192 = pneg %p60
        %p193 = pneg %p57
        %p194 = scmp.lt.s32.totalorder %s18, 1
        %s195 = scalar_select %p194, %s18, 1
        %s196 = scalar_lea.vmem %s2, %s195
        %p197 = pneg %p86
        %p198 = pneg %p83
        %p199 = scmp.lt.s32.totalorder %s18, 1
        %s200 = scalar_select %p199, %s18, 1
        %s201 = scalar_lea.vmem %s3, %s200
        %p202 = pneg %p112
        %p203 = pneg %p109
        %p204 = pneg %p138
        %p205 = pneg %p135
        %s206 = sand.u32 %s125, 1
        %s207 = scalar_lea.sflag [#allocation3], %s206
        %s208 = sand.u32 %s125, 1
        %s209 = smul.addr %s208, 32
        %s210 = scalar_lea.vmem [#allocation2], %s209
        %p211 = scmp.lt.s32.totalorder %s18, 1
        %s212 = scalar_select %p211, %s18, 1
        %s213 = smul.addr %s212, 2
        %s214 = scalar_lea.vmem %s1, %s213
        %p215 = scmp.lt.s32.totalorder %s18, 1
        %s216 = scalar_select %p215, %s18, 1
        %s217 = scalar_lea.vmem %s2, %s216
        %p218 = scmp.lt.s32.totalorder %s18, 1
        %s219 = scalar_select %p218, %s18, 1
        %s220 = scalar_lea.vmem %s3, %s219
        %v221 = vld [vmem:[%s217] sm:$0x1]
        %v222 = vld [vmem:[%s220] sm:$0x1]
        %v223 = vlaneseq
        %v224 = vshrl.u32 %v223, 7
        %v225 = vcvt.s32.f32 %v224
        %v227 = vlaneseq
        %v228 = vshrl.u32 %v227, 7
        %v229 = vsub.s32 0, %v228
        %v230 = vrot.slane %v222, %v229
        %v232 = vsub.f32 %v230, %v225
        %v233 = vand.u32 2147483647, %v232
        %v234 = vsub.f32 1.0, %v233
        %v235 = vmax.f32 %v234, 0.0
        %v237 = vlaneseq
        %v238 = vshrl.u32 %v237, 7
        %v239 = vsub.s32 0, %v238
        %v240 = vrot.slane %v221, %v239
        %v242 = vsub.f32 %v240, %v225
        %v243 = vand.u32 2147483647, %v242
        %v244 = vsub.f32 1.0, %v243
        %v245 = vmax.f32 %v244, 0.0
        %v247 = vcombine.high %v245, %v245
        %v249 = vunpack.c.l.s4 1966171168
        %v250 = vunpack.c.0.s8 %v249
        %v251 = vlaneseq
        %v252 = vshrl.u32 %v251, 7
        %v253 = vsub.s32 %v250, %v252
        %v254 = vrot.slane %v245, %v253
        %v256 = vunpack.c.l.s4 1966171168
        %v257 = vunpack.c.0.s8 %v256
        %v258 = vlaneseq
        %v259 = vshrl.u32 %v258, 7
        %v260 = vsub.s32 %v257, %v259
        %v261 = vrot.slane %v247, %v260
        %v262 = vcombine.high %v254, %v254
        %v263 = vcombine.high %v261, %v261
        %v265 = vunpack.c.l.s4 1966171168
        %v266 = vunpack.c.0.s8 %v265
        %v267 = vlaneseq
        %v268 = vshrl.u32 %v267, 7
        %v269 = vsub.s32 %v266, %v268
        %v270 = vrot.slane %v254, %v269
        %v272 = vunpack.c.l.s4 1966171168
        %v273 = vunpack.c.0.s8 %v272
        %v274 = vlaneseq
        %v275 = vshrl.u32 %v274, 7
        %v276 = vsub.s32 %v273, %v275
        %v277 = vrot.slane %v261, %v276
        %v279 = vunpack.c.l.s4 1966171168
        %v280 = vunpack.c.0.s8 %v279
        %v281 = vlaneseq
        %v282 = vshrl.u32 %v281, 7
        %v283 = vsub.s32 %v280, %v282
        %v284 = vrot.slane %v262, %v283
        %v286 = vunpack.c.l.s4 1966171168
        %v287 = vunpack.c.0.s8 %v286
        %v288 = vlaneseq
        %v289 = vshrl.u32 %v288, 7
        %v290 = vsub.s32 %v287, %v289
        %v291 = vrot.slane %v263, %v290
        %v292 = vcombine.high %v270, %v270
        %v293 = vcombine.high %v277, %v277
        %v294 = vcombine.high %v284, %v284
        %v295 = vcombine.high %v291, %v291
        %v296 = vlaneseq
        %v297 = vshrl.u32 %v296, 7
        %v298 = vsub.s32 0, %v297
        %v299 = vrot.slane %v270, %v298
        %v300 = vlaneseq
        %v301 = vshrl.u32 %v300, 7
        %v302 = vsub.s32 0, %v301
        %v303 = vrot.slane %v284, %v302
        %v304 = vlaneseq
        %v305 = vshrl.u32 %v304, 7
        %v306 = vsub.s32 0, %v305
        %v307 = vrot.slane %v292, %v306
        %v308 = vlaneseq
        %v309 = vshrl.u32 %v308, 7
        %v310 = vsub.s32 0, %v309
        %v311 = vrot.slane %v294, %v310
        %v312 = vlaneseq
        %v313 = vshrl.u32 %v312, 7
        %v314 = vsub.s32 0, %v313
        %v315 = vrot.slane %v277, %v314
        %v316 = vlaneseq
        %v317 = vshrl.u32 %v316, 7
        %v318 = vsub.s32 0, %v317
        %v319 = vrot.slane %v291, %v318
        %v320 = vlaneseq
        %v321 = vshrl.u32 %v320, 7
        %v322 = vsub.s32 0, %v321
        %v323 = vrot.slane %v293, %v322
        %v324 = vlaneseq
        %v325 = vshrl.u32 %v324, 7
        %v326 = vsub.s32 0, %v325
        %v327 = vrot.slane %v295, %v326
        %v336 = vmul.f32 %v299, %v235
        %v337 = vmul.f32 %v303, %v235
        %v338 = vmul.f32 %v307, %v235
        %v339 = vmul.f32 %v311, %v235
        %v340 = vmul.f32 %v315, %v235
        %v341 = vmul.f32 %v319, %v235
        %v342 = vmul.f32 %v323, %v235
        %v343 = vmul.f32 %v327, %v235
        %v344 = vld [vmem:[%s0] sm:$0xff]
        %v345 = vld [vmem:[%s0 + $0x8] sm:$0xff]
        %v346 = vld [vmem:[%s0 + $0x10] sm:$0xff]
        %v347 = vld [vmem:[%s0 + $0x18] sm:$0xff]
        %v348 = vld [vmem:[%s0 + $0x20] sm:$0xff]
        %v349 = vld [vmem:[%s0 + $0x28] sm:$0xff]
        %v350 = vld [vmem:[%s0 + $0x30] sm:$0xff]
        %v351 = vld [vmem:[%s0 + $0x38] sm:$0xff]
        %v352 = vld [vmem:[%s0 + $0x40] sm:$0xff]
        %v353 = vld [vmem:[%s0 + $0x48] sm:$0xff]
        %v354 = vld [vmem:[%s0 + $0x50] sm:$0xff]
        %v355 = vld [vmem:[%s0 + $0x58] sm:$0xff]
        %v356 = vld [vmem:[%s0 + $0x60] sm:$0xff]
        %v357 = vld [vmem:[%s0 + $0x68] sm:$0xff]
        %v358 = vld [vmem:[%s0 + $0x70] sm:$0xff]
        %v359 = vld [vmem:[%s0 + $0x78] sm:$0xff]
        %v360 = vld [vmem:[%s0 + $0x80] sm:$0xff]
        %v361 = vld [vmem:[%s0 + $0x88] sm:$0xff]
        %v362 = vld [vmem:[%s0 + $0x90] sm:$0xff]
        %v363 = vld [vmem:[%s0 + $0x98] sm:$0xff]
        %v364 = vld [vmem:[%s0 + $0xa0] sm:$0xff]
        %v365 = vld [vmem:[%s0 + $0xa8] sm:$0xff]
        %v366 = vld [vmem:[%s0 + $0xb0] sm:$0xff]
        %v367 = vld [vmem:[%s0 + $0xb8] sm:$0xff]
        %v368 = vld [vmem:[%s0 + $0xc0] sm:$0xff]
        %v369 = vld [vmem:[%s0 + $0xc8] sm:$0xff]
        %v370 = vld [vmem:[%s0 + $0xd0] sm:$0xff]
        %v371 = vld [vmem:[%s0 + $0xd8] sm:$0xff]
        %v372 = vld [vmem:[%s0 + $0xe0] sm:$0xff]
        %v373 = vld [vmem:[%s0 + $0xe8] sm:$0xff]
        %v374 = vld [vmem:[%s0 + $0xf0] sm:$0xff]
        %v375 = vld [vmem:[%s0 + $0xf8] sm:$0xff]
        %vm376 = vcmask 523264
        %v378 = vsel %vm376, %v344, 0
        %v381 = vsel %vm376, %v345, 0
        %v384 = vsel %vm376, %v346, 0
        %v387 = vsel %vm376, %v347, 0
        %v390 = vsel %vm376, %v348, 0
        %v393 = vsel %vm376, %v349, 0
        %v396 = vsel %vm376, %v350, 0
        %v399 = vsel %vm376, %v351, 0
        %v402 = vsel %vm376, %v352, 0
        %v405 = vsel %vm376, %v353, 0
        %v408 = vsel %vm376, %v354, 0
        %v411 = vsel %vm376, %v355, 0
        %v414 = vsel %vm376, %v356, 0
        %v417 = vsel %vm376, %v357, 0
        %v420 = vsel %vm376, %v358, 0
        %v423 = vsel %vm376, %v359, 0
        %v426 = vsel %vm376, %v360, 0
        %v429 = vsel %vm376, %v361, 0
        %v432 = vsel %vm376, %v362, 0
        %v435 = vsel %vm376, %v363, 0
        %v438 = vsel %vm376, %v364, 0
        %v441 = vsel %vm376, %v365, 0
        %v444 = vsel %vm376, %v366, 0
        %v447 = vsel %vm376, %v367, 0
        %v450 = vsel %vm376, %v368, 0
        %v453 = vsel %vm376, %v369, 0
        %v456 = vsel %vm376, %v370, 0
        %v459 = vsel %vm376, %v371, 0
        %v462 = vsel %vm376, %v372, 0
        %v465 = vsel %vm376, %v373, 0
        %v468 = vsel %vm376, %v374, 0
        %v471 = vsel %vm376, %v375, 0
        %473 = vmatprep.subr.mxu0 0.0
        %474 = vmatpush1.msra.mxu0 %v336
        %475 = vmatprep.subr.mxu0 0.0
        %476 = vmatpush1.msra.mxu0 %v337
        %477 = vmatprep.subr.mxu0 0.0
        %478 = vmatpush1.msra.mxu0 %v338
        %479 = vmatprep.subr.mxu0 0.0
        %480 = vmatpush1.msra.mxu0 %v339
        %481 = vmatprep.subr.mxu0 0.0
        %482 = vmatpush1.msra.mxu0 %v340
        %483 = vmatprep.subr.mxu0 0.0
        %484 = vmatpush1.msra.mxu0 %v341
        %485 = vmatprep.subr.mxu0 0.0
        %486 = vmatpush1.msra.mxu0 %v342
        %487 = vmatprep.subr.mxu0 0.0
        %488 = vmatpush1.msra.mxu0 %v343
        %489 = vmatprep.subr.mxu0 0.0
        %490 = vmatpush1.msra.mxu0 0.0
        %491 = vmatprep.subr.mxu0 0.0
        %492 = vmatpush1.msra.mxu0 0.0
        %493 = vmatprep.subr.mxu0 0.0
        %494 = vmatpush1.msra.mxu0 0.0
        %495 = vmatprep.subr.mxu0 0.0
        %496 = vmatpush1.msra.mxu0 0.0
        %497 = vmatprep.subr.mxu0 0.0
        %498 = vmatpush1.msra.mxu0 0.0
        %499 = vmatprep.subr.mxu0 0.0
        %500 = vmatpush1.msra.mxu0 0.0
        %501 = vmatprep.subr.mxu0 0.0
        %502 = vmatpush1.msra.mxu0 0.0
        %503 = vmatprep.subr.mxu0 0.0
        %504 = vmatpush1.msra.mxu0 0.0
        %505 = vmatprep.subr.mxu0 0.0
        %506 = vmatpush1.msra.mxu0 0.0
        %507 = vmatprep.subr.mxu0 0.0
        %508 = vmatpush1.msra.mxu0 0.0
        %509 = vmatprep.subr.mxu0 0.0
        %510 = vmatpush1.msra.mxu0 0.0
        %511 = vmatprep.subr.mxu0 0.0
        %512 = vmatpush1.msra.mxu0 0.0
        %513 = vmatprep.subr.mxu0 0.0
        %514 = vmatpush1.msra.mxu0 0.0
        %515 = vmatprep.subr.mxu0 0.0
        %516 = vmatpush1.msra.mxu0 0.0
        %517 = vmatprep.subr.mxu0 0.0
        %518 = vmatpush1.msra.mxu0 0.0
        %519 = vmatprep.subr.mxu0 0.0
        %520 = vmatpush1.msra.mxu0 0.0
        %521 = vmatprep.subr.mxu0 0.0
        %522 = vmatpush1.msra.mxu0 0.0
        %523 = vmatprep.subr.mxu0 0.0
        %524 = vmatpush1.msra.mxu0 0.0
        %525 = vmatprep.subr.mxu0 0.0
        %526 = vmatpush1.msra.mxu0 0.0
        %527 = vmatprep.subr.mxu0 0.0
        %528 = vmatpush1.msra.mxu0 0.0
        %529 = vmatprep.subr.mxu0 0.0
        %530 = vmatpush1.msra.mxu0 0.0
        %531 = vmatprep.subr.mxu0 0.0
        %532 = vmatpush1.msra.mxu0 0.0
        %533 = vmatprep.subr.mxu0 0.0
        %534 = vmatpush1.msra.mxu0 0.0
        %535 = vmatprep.subr.mxu0 0.0
        %536 = vmatpush1.msra.mxu0 0.0
        %537 = vmatprep.mubr.f32.mxu0 0.0
        %538 = vmatmul.mubr.f32.gmra.mrb[0].mxu0 %v378
        %v539 = vpop.f32.mrb[0].mxu0
        %v540 = vadd.f32 0.0, %v539
        %v541 = vpop.f32.mrb[0].mxu0
        %542 = vmatprep.mubr.f32.mxu0 0.0
        %543 = vmatmul.mubr.f32.gmra.mrb[0].mxu0 %v381
        %v544 = vpop.f32.mrb[0].mxu0
        %v545 = vadd.f32 0.0, %v544
        %v546 = vpop.f32.mrb[0].mxu0
        %547 = vmatprep.mubr.f32.mxu0 0.0
        %548 = vmatmul.mubr.f32.gmra.mrb[0].mxu0 %v384
        %v549 = vpop.f32.mrb[0].mxu0
        %v550 = vadd.f32 0.0, %v549
        %v551 = vpop.f32.mrb[0].mxu0
        %552 = vmatprep.mubr.f32.mxu0 0.0
        %553 = vmatmul.mubr.f32.gmra.mrb[0].mxu0 %v387
        %v554 = vpop.f32.mrb[0].mxu0
        %v555 = vadd.f32 0.0, %v554
        %v556 = vpop.f32.mrb[0].mxu0
        %557 = vmatprep.mubr.f32.mxu0 0.0
        %558 = vmatmul.mubr.f32.gmra.mrb[0].mxu0 %v390
        %v559 = vpop.f32.mrb[0].mxu0
        %v560 = vadd.f32 0.0, %v559
        %v561 = vpop.f32.mrb[0].mxu0
        %562 = vmatprep.mubr.f32.mxu0 0.0
        %563 = vmatmul.mubr.f32.gmra.mrb[0].mxu0 %v393
        %v564 = vpop.f32.mrb[0].mxu0
        %v565 = vadd.f32 0.0, %v564
        %v566 = vpop.f32.mrb[0].mxu0
        %567 = vmatprep.mubr.f32.mxu0 0.0
        %568 = vmatmul.mubr.f32.gmra.mrb[0].mxu0 %v396
        %v569 = vpop.f32.mrb[0].mxu0
        %v570 = vadd.f32 0.0, %v569
        %v571 = vpop.f32.mrb[0].mxu0
        %572 = vmatprep.mubr.f32.mxu0 0.0
        %573 = vmatmul.mubr.f32.gmra.mrb[0].mxu0 %v399
        %v574 = vpop.f32.mrb[0].mxu0
        %v575 = vadd.f32 0.0, %v574
        %v576 = vpop.f32.mrb[0].mxu0
        %577 = vmatprep.mubr.f32.mxu0 0.0
        %578 = vmatmul.mubr.f32.gmra.mrb[0].mxu0 %v402
        %v579 = vpop.f32.mrb[0].mxu0
        %v580 = vadd.f32 0.0, %v579
        %v581 = vpop.f32.mrb[0].mxu0
        %582 = vmatprep.mubr.f32.mxu0 0.0
        %583 = vmatmul.mubr.f32.gmra.mrb[0].mxu0 %v405
        %v584 = vpop.f32.mrb[0].mxu0
        %v585 = vadd.f32 0.0, %v584
        %v586 = vpop.f32.mrb[0].mxu0
        %587 = vmatprep.mubr.f32.mxu0 0.0
        %588 = vmatmul.mubr.f32.gmra.mrb[0].mxu0 %v408
        %v589 = vpop.f32.mrb[0].mxu0
        %v590 = vadd.f32 0.0, %v589
        %v591 = vpop.f32.mrb[0].mxu0
        %592 = vmatprep.mubr.f32.mxu0 0.0
        %593 = vmatmul.mubr.f32.gmra.mrb[0].mxu0 %v411
        %v594 = vpop.f32.mrb[0].mxu0
        %v595 = vadd.f32 0.0, %v594
        %v596 = vpop.f32.mrb[0].mxu0
        %597 = vmatprep.mubr.f32.mxu0 0.0
        %598 = vmatmul.mubr.f32.gmra.mrb[0].mxu0 %v414
        %v599 = vpop.f32.mrb[0].mxu0
        %v600 = vadd.f32 0.0, %v599
        %v601 = vpop.f32.mrb[0].mxu0
        %602 = vmatprep.mubr.f32.mxu0 0.0
        %603 = vmatmul.mubr.f32.gmra.mrb[0].mxu0 %v417
        %v604 = vpop.f32.mrb[0].mxu0
        %v605 = vadd.f32 0.0, %v604
        %v606 = vpop.f32.mrb[0].mxu0
        %607 = vmatprep.mubr.f32.mxu0 0.0
        %608 = vmatmul.mubr.f32.gmra.mrb[0].mxu0 %v420
        %v609 = vpop.f32.mrb[0].mxu0
        %v610 = vadd.f32 0.0, %v609
        %v611 = vpop.f32.mrb[0].mxu0
        %612 = vmatprep.mubr.f32.mxu0 0.0
        %613 = vmatmul.mubr.f32.gmra.mrb[0].mxu0 %v423
        %v614 = vpop.f32.mrb[0].mxu0
        %v615 = vadd.f32 0.0, %v614
        %v616 = vpop.f32.mrb[0].mxu0
        %617 = vmatprep.mubr.f32.mxu0 0.0
        %618 = vmatmul.mubr.f32.gmra.mrb[0].mxu0 %v426
        %v619 = vpop.f32.mrb[0].mxu0
        %v620 = vadd.f32 0.0, %v619
        %v621 = vpop.f32.mrb[0].mxu0
        %622 = vmatprep.mubr.f32.mxu0 0.0
        %623 = vmatmul.mubr.f32.gmra.mrb[0].mxu0 %v429
        %v624 = vpop.f32.mrb[0].mxu0
        %v625 = vadd.f32 0.0, %v624
        %v626 = vpop.f32.mrb[0].mxu0
        %627 = vmatprep.mubr.f32.mxu0 0.0
        %628 = vmatmul.mubr.f32.gmra.mrb[0].mxu0 %v432
        %v629 = vpop.f32.mrb[0].mxu0
        %v630 = vadd.f32 0.0, %v629
        %v631 = vpop.f32.mrb[0].mxu0
        %632 = vmatprep.mubr.f32.mxu0 0.0
        %633 = vmatmul.mubr.f32.gmra.mrb[0].mxu0 %v435
        %v634 = vpop.f32.mrb[0].mxu0
        %v635 = vadd.f32 0.0, %v634
        %v636 = vpop.f32.mrb[0].mxu0
        %637 = vmatprep.mubr.f32.mxu0 0.0
        %638 = vmatmul.mubr.f32.gmra.mrb[0].mxu0 %v438
        %v639 = vpop.f32.mrb[0].mxu0
        %v640 = vadd.f32 0.0, %v639
        %v641 = vpop.f32.mrb[0].mxu0
        %642 = vmatprep.mubr.f32.mxu0 0.0
        %643 = vmatmul.mubr.f32.gmra.mrb[0].mxu0 %v441
        %v644 = vpop.f32.mrb[0].mxu0
        %v645 = vadd.f32 0.0, %v644
        %v646 = vpop.f32.mrb[0].mxu0
        %647 = vmatprep.mubr.f32.mxu0 0.0
        %648 = vmatmul.mubr.f32.gmra.mrb[0].mxu0 %v444
        %v649 = vpop.f32.mrb[0].mxu0
        %v650 = vadd.f32 0.0, %v649
        %v651 = vpop.f32.mrb[0].mxu0
        %652 = vmatprep.mubr.f32.mxu0 0.0
        %653 = vmatmul.mubr.f32.gmra.mrb[0].mxu0 %v447
        %v654 = vpop.f32.mrb[0].mxu0
        %v655 = vadd.f32 0.0, %v654
        %v656 = vpop.f32.mrb[0].mxu0
        %657 = vmatprep.mubr.f32.mxu0 0.0
        %658 = vmatmul.mubr.f32.gmra.mrb[0].mxu0 %v450
        %v659 = vpop.f32.mrb[0].mxu0
        %v660 = vadd.f32 0.0, %v659
        %v661 = vpop.f32.mrb[0].mxu0
        %662 = vmatprep.mubr.f32.mxu0 0.0
        %663 = vmatmul.mubr.f32.gmra.mrb[0].mxu0 %v453
        %v664 = vpop.f32.mrb[0].mxu0
        %v665 = vadd.f32 0.0, %v664
        %v666 = vpop.f32.mrb[0].mxu0
        %667 = vmatprep.mubr.f32.mxu0 0.0
        %668 = vmatmul.mubr.f32.gmra.mrb[0].mxu0 %v456
        %v669 = vpop.f32.mrb[0].mxu0
        %v670 = vadd.f32 0.0, %v669
        %v671 = vpop.f32.mrb[0].mxu0
        %672 = vmatprep.mubr.f32.mxu0 0.0
        %673 = vmatmul.mubr.f32.gmra.mrb[0].mxu0 %v459
        %v674 = vpop.f32.mrb[0].mxu0
        %v675 = vadd.f32 0.0, %v674
        %v676 = vpop.f32.mrb[0].mxu0
        %677 = vmatprep.mubr.f32.mxu0 0.0
        %678 = vmatmul.mubr.f32.gmra.mrb[0].mxu0 %v462
        %v679 = vpop.f32.mrb[0].mxu0
        %v680 = vadd.f32 0.0, %v679
        %v681 = vpop.f32.mrb[0].mxu0
        %682 = vmatprep.mubr.f32.mxu0 0.0
        %683 = vmatmul.mubr.f32.gmra.mrb[0].mxu0 %v465
        %v684 = vpop.f32.mrb[0].mxu0
        %v685 = vadd.f32 0.0, %v684
        %v686 = vpop.f32.mrb[0].mxu0
        %687 = vmatprep.mubr.f32.mxu0 0.0
        %688 = vmatmul.mubr.f32.gmra.mrb[0].mxu0 %v468
        %v689 = vpop.f32.mrb[0].mxu0
        %v690 = vadd.f32 0.0, %v689
        %v691 = vpop.f32.mrb[0].mxu0
        %692 = vmatprep.mubr.f32.mxu0 0.0
        %693 = vmatmul.mubr.f32.gmra.mrb[0].mxu0 %v471
        %v694 = vpop.f32.mrb[0].mxu0
        %v695 = vadd.f32 0.0, %v694
        %v696 = vpop.f32.mrb[0].mxu0
        %697 = vdwg.mxu0
        %v698 = vld [vmem:[%s214] sm:$0x3]
        %v699 = vadd.f32 %v698, 1.0
        %v700 = vmul.f32 %v699, 8.0
        %v701 = vsub.f32 %v700, 1.0
        %v702 = vmul.f32 %v701, 0.5
        %v705 = vunpack.c.l.s4 1966171168
        %v706 = vunpack.c.0.s8 %v705
        %v707 = vlaneseq
        %v708 = vshrl.u32 %v707, 7
        %v709 = vsub.s32 %v706, %v708
        %v710 = vrot.slane %v702, %v709
        %v711 = vcombine.high %v710, %v710
        %v713 = vunpack.c.l.s4 1966171168
        %v714 = vunpack.c.0.s8 %v713
        %v715 = vlaneseq
        %v716 = vshrl.u32 %v715, 7
        %v717 = vsub.s32 %v714, %v716
        %v718 = vrot.slane %v710, %v717
        %v720 = vunpack.c.l.s4 1966171168
        %v721 = vunpack.c.0.s8 %v720
        %v722 = vlaneseq
        %v723 = vshrl.u32 %v722, 7
        %v724 = vsub.s32 %v721, %v723
        %v725 = vrot.slane %v711, %v724
        %v726 = vlaneseq
        %v727 = vshrl.u32 %v726, 7
        %v728 = vsub.s32 0, %v727
        %v729 = vrot.slane %v718, %v728
        %v730 = vlaneseq
        %v731 = vshrl.u32 %v730, 7
        %v732 = vsub.s32 0, %v731
        %v733 = vrot.slane %v725, %v732
        %v736 = vsub.f32 %v729, %v225
        %v737 = vsub.f32 %v733, %v225
        %v738 = vand.u32 2147483647, %v736
        %v739 = vand.u32 2147483647, %v737
        %v740 = vsub.f32 1.0, %v738
        %v741 = vsub.f32 1.0, %v739
        %v742 = vmax.f32 %v740, 0.0
        %v743 = vmax.f32 %v741, 0.0
        %v746 = vcombine.high %v742, %v742
        %v748 = vunpack.c.l.s4 1966171168
        %v749 = vunpack.c.0.s8 %v748
        %v750 = vlaneseq
        %v751 = vshrl.u32 %v750, 7
        %v752 = vsub.s32 %v749, %v751
        %v753 = vrot.slane %v742, %v752
        %v755 = vunpack.c.l.s4 1966171168
        %v756 = vunpack.c.0.s8 %v755
        %v757 = vlaneseq
        %v758 = vshrl.u32 %v757, 7
        %v759 = vsub.s32 %v756, %v758
        %v760 = vrot.slane %v746, %v759
        %v761 = vcombine.high %v753, %v753
        %v762 = vcombine.high %v760, %v760
        %v764 = vunpack.c.l.s4 1966171168
        %v765 = vunpack.c.0.s8 %v764
        %v766 = vlaneseq
        %v767 = vshrl.u32 %v766, 7
        %v768 = vsub.s32 %v765, %v767
        %v769 = vrot.slane %v753, %v768
        %v771 = vunpack.c.l.s4 1966171168
        %v772 = vunpack.c.0.s8 %v771
        %v773 = vlaneseq
        %v774 = vshrl.u32 %v773, 7
        %v775 = vsub.s32 %v772, %v774
        %v776 = vrot.slane %v760, %v775
        %v778 = vunpack.c.l.s4 1966171168
        %v779 = vunpack.c.0.s8 %v778
        %v780 = vlaneseq
        %v781 = vshrl.u32 %v780, 7
        %v782 = vsub.s32 %v779, %v781
        %v783 = vrot.slane %v761, %v782
        %v785 = vunpack.c.l.s4 1966171168
        %v786 = vunpack.c.0.s8 %v785
        %v787 = vlaneseq
        %v788 = vshrl.u32 %v787, 7
        %v789 = vsub.s32 %v786, %v788
        %v790 = vrot.slane %v762, %v789
        %v791 = vcombine.high %v769, %v769
        %v792 = vcombine.high %v776, %v776
        %v793 = vcombine.high %v783, %v783
        %v794 = vcombine.high %v790, %v790
        %v795 = vcombine.high %v743, %v743
        %v797 = vunpack.c.l.s4 1966171168
        %v798 = vunpack.c.0.s8 %v797
        %v799 = vlaneseq
        %v800 = vshrl.u32 %v799, 7
        %v801 = vsub.s32 %v798, %v800
        %v802 = vrot.slane %v743, %v801
        %v804 = vunpack.c.l.s4 1966171168
        %v805 = vunpack.c.0.s8 %v804
        %v806 = vlaneseq
        %v807 = vshrl.u32 %v806, 7
        %v808 = vsub.s32 %v805, %v807
        %v809 = vrot.slane %v795, %v808
        %v810 = vcombine.high %v802, %v802
        %v811 = vcombine.high %v809, %v809
        %v813 = vunpack.c.l.s4 1966171168
        %v814 = vunpack.c.0.s8 %v813
        %v815 = vlaneseq
        %v816 = vshrl.u32 %v815, 7
        %v817 = vsub.s32 %v814, %v816
        %v818 = vrot.slane %v802, %v817
        %v820 = vunpack.c.l.s4 1966171168
        %v821 = vunpack.c.0.s8 %v820
        %v822 = vlaneseq
        %v823 = vshrl.u32 %v822, 7
        %v824 = vsub.s32 %v821, %v823
        %v825 = vrot.slane %v809, %v824
        %v827 = vunpack.c.l.s4 1966171168
        %v828 = vunpack.c.0.s8 %v827
        %v829 = vlaneseq
        %v830 = vshrl.u32 %v829, 7
        %v831 = vsub.s32 %v828, %v830
        %v832 = vrot.slane %v810, %v831
        %v834 = vunpack.c.l.s4 1966171168
        %v835 = vunpack.c.0.s8 %v834
        %v836 = vlaneseq
        %v837 = vshrl.u32 %v836, 7
        %v838 = vsub.s32 %v835, %v837
        %v839 = vrot.slane %v811, %v838
        %v840 = vcombine.high %v818, %v818
        %v841 = vcombine.high %v825, %v825
        %v842 = vcombine.high %v832, %v832
        %v843 = vcombine.high %v839, %v839
        %v844 = vlaneseq
        %v845 = vshrl.u32 %v844, 7
        %v846 = vsub.s32 0, %v845
        %v847 = vrot.slane %v769, %v846
        %v848 = vlaneseq
        %v849 = vshrl.u32 %v848, 7
        %v850 = vsub.s32 0, %v849
        %v851 = vrot.slane %v783, %v850
        %v852 = vlaneseq
        %v853 = vshrl.u32 %v852, 7
        %v854 = vsub.s32 0, %v853
        %v855 = vrot.slane %v791, %v854
        %v856 = vlaneseq
        %v857 = vshrl.u32 %v856, 7
        %v858 = vsub.s32 0, %v857
        %v859 = vrot.slane %v793, %v858
        %v860 = vlaneseq
        %v861 = vshrl.u32 %v860, 7
        %v862 = vsub.s32 0, %v861
        %v863 = vrot.slane %v776, %v862
        %v864 = vlaneseq
        %v865 = vshrl.u32 %v864, 7
        %v866 = vsub.s32 0, %v865
        %v867 = vrot.slane %v790, %v866
        %v868 = vlaneseq
        %v869 = vshrl.u32 %v868, 7
        %v870 = vsub.s32 0, %v869
        %v871 = vrot.slane %v792, %v870
        %v872 = vlaneseq
        %v873 = vshrl.u32 %v872, 7
        %v874 = vsub.s32 0, %v873
        %v875 = vrot.slane %v794, %v874
        %v876 = vlaneseq
        %v877 = vshrl.u32 %v876, 7
        %v878 = vsub.s32 0, %v877
        %v879 = vrot.slane %v818, %v878
        %v880 = vlaneseq
        %v881 = vshrl.u32 %v880, 7
        %v882 = vsub.s32 0, %v881
        %v883 = vrot.slane %v832, %v882
        %v884 = vlaneseq
        %v885 = vshrl.u32 %v884, 7
        %v886 = vsub.s32 0, %v885
        %v887 = vrot.slane %v840, %v886
        %v888 = vlaneseq
        %v889 = vshrl.u32 %v888, 7
        %v890 = vsub.s32 0, %v889
        %v891 = vrot.slane %v842, %v890
        %v892 = vlaneseq
        %v893 = vshrl.u32 %v892, 7
        %v894 = vsub.s32 0, %v893
        %v895 = vrot.slane %v825, %v894
        %v896 = vlaneseq
        %v897 = vshrl.u32 %v896, 7
        %v898 = vsub.s32 0, %v897
        %v899 = vrot.slane %v839, %v898
        %v900 = vlaneseq
        %v901 = vshrl.u32 %v900, 7
        %v902 = vsub.s32 0, %v901
        %v903 = vrot.slane %v841, %v902
        %v904 = vlaneseq
        %v905 = vshrl.u32 %v904, 7
        %v906 = vsub.s32 0, %v905
        %v907 = vrot.slane %v843, %v906
        %v924 = vmul.f32 %v540, %v847
        %v925 = vmul.f32 %v545, %v847
        %v926 = vmul.f32 %v550, %v851
        %v927 = vmul.f32 %v555, %v851
        %v928 = vmul.f32 %v560, %v855
        %v929 = vmul.f32 %v565, %v855
        %v930 = vmul.f32 %v570, %v859
        %v931 = vmul.f32 %v575, %v859
        %v932 = vmul.f32 %v580, %v863
        %v933 = vmul.f32 %v585, %v863
        %v934 = vmul.f32 %v590, %v867
        %v935 = vmul.f32 %v595, %v867
        %v936 = vmul.f32 %v600, %v871
        %v937 = vmul.f32 %v605, %v871
        %v938 = vmul.f32 %v610, %v875
        %v939 = vmul.f32 %v615, %v875
        %v940 = vmul.f32 %v620, %v879
        %v941 = vmul.f32 %v625, %v879
        %v942 = vmul.f32 %v630, %v883
        %v943 = vmul.f32 %v635, %v883
        %v944 = vmul.f32 %v640, %v887
        %v945 = vmul.f32 %v645, %v887
        %v946 = vmul.f32 %v650, %v891
        %v947 = vmul.f32 %v655, %v891
        %v948 = vmul.f32 %v660, %v895
        %v949 = vmul.f32 %v665, %v895
        %v950 = vmul.f32 %v670, %v899
        %v951 = vmul.f32 %v675, %v899
        %v952 = vmul.f32 %v680, %v903
        %v953 = vmul.f32 %v685, %v903
        %v954 = vmul.f32 %v690, %v907
        %v955 = vmul.f32 %v695, %v907
        %v956 = vadd.f32 %v924, %v926
        %v957 = vadd.f32 %v956, %v928
        %v958 = vadd.f32 %v957, %v930
        %v959 = vadd.f32 %v958, %v932
        %v960 = vadd.f32 %v959, %v934
        %v961 = vadd.f32 %v960, %v936
        %v962 = vadd.f32 %v961, %v938
        %v963 = vadd.f32 %v925, %v927
        %v964 = vadd.f32 %v963, %v929
        %v965 = vadd.f32 %v964, %v931
        %v966 = vadd.f32 %v965, %v933
        %v967 = vadd.f32 %v966, %v935
        %v968 = vadd.f32 %v967, %v937
        %v969 = vadd.f32 %v968, %v939
        %v970 = vadd.f32 %v940, %v942
        %v971 = vadd.f32 %v970, %v944
        %v972 = vadd.f32 %v971, %v946
        %v973 = vadd.f32 %v972, %v948
        %v974 = vadd.f32 %v973, %v950
        %v975 = vadd.f32 %v974, %v952
        %v976 = vadd.f32 %v975, %v954
        %v977 = vadd.f32 %v941, %v943
        %v978 = vadd.f32 %v977, %v945
        %v979 = vadd.f32 %v978, %v947
        %v980 = vadd.f32 %v979, %v949
        %v981 = vadd.f32 %v980, %v951
        %v982 = vadd.f32 %v981, %v953
        %v983 = vadd.f32 %v982, %v955
        %984 = vst [vmem:[%s210] sm:$0xff] %v962
        %985 = vst [vmem:[%s210 + $0x8] sm:$0xff] %v969
        %986 = vst [vmem:[%s210 + $0x10] sm:$0xff] %v976
        %987 = vst [vmem:[%s210 + $0x18] sm:$0xff] %v983
        %s988 = sand.u32 %s125, 1
        %s989 = scalar_lea.sflag [#allocation3], %s988
        %s990 = sand.u32 %s125, 1
        %s991 = smul.addr %s990, 32
        %s992 = scalar_lea.vmem [#allocation2], %s991
        // Predicated region
        $region37: #{tpu_custom_call.1} parent=35 // pred_check
          %p993 = pneg %p135
        $region38: #{tpu_custom_call.1} parent=35 // pred_check_branch
          %995 = sbr.rel (%p993) target = $region40
        $region39: #{tpu_custom_call.1} parent=35 // pred_region
          %s997 = ssub.s32 512, 512
          %998 = vsyncadd %s989, %s997
          %s999 = smul.addr %s18, 128
          %s1000 = scalar_lea.hbm %s4, %s999
          %s1001 = sshll.u32 %s992, 4
          %s1002 = int_to_ptr.vmem [resolvable:$true] %s1001
          %1007 = dma.vmem_to_hbm [thread:$0]  %s1002, 512, %s1000, %s989, 128, 256, 8
        $region40: #{tpu_custom_call.1} parent=35 // pred_fallthru
          _
      $region36: #{tpu_custom_call.1} parent=5 // pred_fallthru
        _
      %p1008 = scmp.le.s32.totalorder 2, %s13
      // Predicated region
      $region41: #{tpu_custom_call.1} parent=5 // pred_check
        %p1009 = pneg %p1008
      $region42: #{tpu_custom_call.1} parent=5 // pred_check_branch
        %1011 = sbr.rel (%p1009) target = $region44
      $region43: #{tpu_custom_call.1} parent=5 // pred_region
        %s1012 = ssub.s32 %s13, 2
        // Predicated region
        $region45: #{tpu_custom_call.1} parent=43 // pred_check
          %p1013 = pneg %p141
        $region46: #{tpu_custom_call.1} parent=43 // pred_check_branch
          %1015 = sbr.rel (%p1013) target = $region48
        $region47: #{tpu_custom_call.1} parent=43 // pred_region
          %s1016 = sand.u32 %s126, 1
          %s1017 = scalar_lea.sflag [#allocation3], %s1016
          %s1018 = sand.u32 %s126, 1
          %s1019 = smul.addr %s1018, 32
          %s1020 = scalar_lea.vmem [#allocation2], %s1019
          %1021 = dma.done %s1017, 512
        $region48: #{tpu_custom_call.1} parent=43 // pred_fallthru
          _
      $region44: #{tpu_custom_call.1} parent=5 // pred_fallthru
        _
    $region6: #{tpu_custom_call.1} parent=1 // loop_footer
      %s17 = sadd.s32 1, %s13
    $region7: #{tpu_custom_call.1} parent=1 // loop_footer_branch
      %12 = sbr.rel target = $region3
    $region8: #{tpu_custom_call.1} parent=1 // loop_exit
      _
    %1022 = vsyncpa [#allocation3], 1
    %s1023 = scalar_lea.sflag [#allocation3], 1
    %1024 = vsyncpa %s1023, 1

</llo_original>
